<compile_context>
chip_gen: v5e
topology: v5e:2x2
jax: 0.10.0
libtpu: 0.0.40
codegen_flags: <defaults>
</compile_context>

<pallas_src>
import functools
import math

import jax
import jax.numpy as jnp
from jax.experimental import pallas as pl
from jax.experimental.pallas import tpu as pltpu


_MAX_CHUNKS = 8            # max unrolled column-chunk adds inside the kernel
_MIN_PIPELINE_BYTES = 1 << 20   # above this, force >= 4 grid steps


def _cdiv(a: int, b: int) -> int:
    return -(-a // b)


def make_positional_encoding_table(d_model: int,
                                   max_len: int = 5000,
                                   dtype=jnp.float32) -> jnp.ndarray:
    """Sinusoidal table, shape (max_len, d_model); matches the PyTorch buffer."""
    position = jnp.arange(max_len, dtype=jnp.float32)[:, None]          # (L, 1)
    col = jnp.arange(d_model)                                           # (D,)
    exponent = (2 * (col // 2)).astype(jnp.float32) * (-math.log(10000.0) / d_model)
    angles = position * jnp.exp(exponent)[None, :]                      # (L, D)
    pe = jnp.where((col % 2) == 0, jnp.sin(angles), jnp.cos(angles))    # (L, D)
    return pe.astype(dtype)


def _pe_add_kernel(x_ref, pe_ref, o_ref, *, pe_width: int, tile_lanes: int):
    """o = x + pe, where pe (TR, W) is the per-row pattern for every aligned
    W-lane column chunk of the (TR, TL) x block.  All slices are static and
    128-aligned -> pure full-vreg adds, no shuffles, no VMEM temps."""
    pe = pe_ref[...]
    for start in range(0, tile_lanes, pe_width):
        width = min(pe_width, tile_lanes - start)
        o_ref[:, start:start + width] = (
            x_ref[:, start:start + width] + pe[:, :width])


def positional_encoding_forward(x: jnp.ndarray,
                                pe_table: jnp.ndarray,
                                *,
                                max_tile_bytes: int = 4 << 20,
                                donate_x: bool = False) -> jnp.ndarray:
    """x: (seq_len, batch, d_model); pe_table: (max_len, d_model)."""
    S, B, D = x.shape
    if S > pe_table.shape[0]:
        raise ValueError(
            f"seq_len={S} exceeds positional-encoding max_len={pe_table.shape[0]}")

    dtype = x.dtype
    itemsize = jnp.dtype(dtype).itemsize
    sublane = 8 * max(1, 4 // itemsize)          # f32 -> 8, bf16 -> 16, int8 -> 32

    # ---- lane folding so every row is a multiple of 128 lanes -------------
    lanes = B * D
    k = 1 if lanes % 128 == 0 else 128 // math.gcd(lanes, 128)
    S_pad = _cdiv(S, k) * k
    R = S_pad // k                                # folded rows
    RW = k * lanes                                # folded row width (mult of 128)

    pe_rows = pe_table[:S].astype(dtype)          # (S, D), cast once
    x2 = x.reshape(S, lanes)
    if S_pad != S:                                # ragged fold tail: zero-pad, slice later
        pe_rows = jnp.concatenate(
            [pe_rows, jnp.zeros((S_pad - S, D), dtype)], axis=0)
        x2 = jnp.concatenate(
            [x2, jnp.zeros((S_pad - S, lanes), dtype)], axis=0)
    xf = x2.reshape(R, RW)

    # pe pattern period along the folded lane axis
    if k == 1:
        pw = D * (128 // math.gcd(D, 128))        # lcm(D, 128); divides RW
    else:
        pw = RW                                   # whole folded row

    # ---- lane tiling (2nd grid dim only when a single row span is too big) -
    row_bytes = RW * itemsize
    if row_bytes <= max_tile_bytes:
        tl = RW
    else:
        tl = max(pw, (max_tile_bytes // (pw * itemsize)) * pw)
    n_lane_tiles = _cdiv(RW, tl)

    # pe operand width: multiple of the period, sized so the in-kernel chunk
    # loop stays short (<= _MAX_CHUNKS adds) while pe HBM traffic stays ~R*W.
    m = tl // pw
    W = min(tl, pw * _cdiv(m, _MAX_CHUNKS))

    if k == 1:
        pe_op = jnp.tile(pe_rows, (1, W // D))                     # (R, W)
    else:
        pe_op = jnp.broadcast_to(
            pe_rows.reshape(R, k, 1, D), (R, k, B, D)).reshape(R, RW)  # W == RW

    # ---- row tiling --------------------------------------------------------
    rows_budget = max(1, max_tile_bytes // (tl * itemsize))
    if rows_budget >= R:
        tr = R                                     # full dim (always legal)
    else:
        tr = max(sublane, (rows_budget // sublane) * sublane)
        if tr >= R:
            tr = R
    n_row_tiles = _cdiv(R, tr)

    # No single-tile fallback: force >= 4 grid steps on non-tiny inputs so the
    # pipeline double-buffers and both v7x TensorCores get tiles.
    if x.size * itemsize >= _MIN_PIPELINE_BYTES and n_row_tiles * n_lane_tiles < 4:
        target = _cdiv(4, n_lane_tiles)
        tr_cap = max(sublane, (_cdiv(R, target) // sublane) * sublane)
        if tr_cap < tr:
            tr = tr_cap
            n_row_tiles = _cdiv(R, tr)

    kernel = functools.partial(_pe_add_kernel, pe_width=W, tile_lanes=tl)

    cost = pl.CostEstimate(
        flops=S * B * D,
        transcendentals=0,
        bytes_accessed=(2 * S_pad * lanes + R * W) * itemsize,
    )

    out = pl.pallas_call(
        kernel,
        out_shape=jax.ShapeDtypeStruct((R, RW), dtype),
        grid=(n_row_tiles, n_lane_tiles),
        in_specs=[
            pl.BlockSpec((tr, tl), lambda i, j: (i, j)),   # x tile
            pl.BlockSpec((tr, W), lambda i, j: (i, 0)),    # pe pattern (re-used across j)
        ],
        out_specs=pl.BlockSpec((tr, tl), lambda i, j: (i, j)),
        compiler_params=pltpu.CompilerParams(
            dimension_semantics=("parallel", "parallel"),  # dual-TC sharding on v7x
            vmem_limit_bytes=32 << 20,                     # safe on v5e/v6e/v7x
        ),
        cost_estimate=cost,
        input_output_aliases={0: 0} if donate_x else {},
    )(xf, pe_op)

    return out.reshape(S_pad, lanes)[:S].reshape(S, B, D)


if __name__ == "__main__":
    key = jax.random.PRNGKey(0)
    ks = jax.random.split(key, 5)

    d_model = 32
    pe_table = make_positional_encoding_table(d_model, max_len=5000)

    def reference(x):
        s = x.shape[0]
        return x + pe_table[:s][:, None, :].astype(x.dtype)

    cases = [
        # 1) spec config (seq=8, batch=2, d_model=32): 64 lanes -> folded to 128.
        (jax.random.normal(ks[0], (8, 2, d_model), dtype=jnp.float32), {}),
        # 2) multi row tiles with a ragged last tile (R=28, 8-row tiles -> 4 steps).
        (jax.random.normal(ks[1], (56, 2, d_model), dtype=jnp.float32),
         {"max_tile_bytes": 4096}),
        # 3) seq not a multiple of the fold factor -> padded tail path.
        (jax.random.normal(ks[2], (9, 2, d_model), dtype=jnp.float32), {}),
        # 4) lane-aligned path (256 lanes), tiny budget -> 2x2 grid, chunked pe add.
        (jax.random.normal(ks[3], (16, 8, d_model), dtype=jnp.float32),
         {"max_tile_bytes": 512}),
        # 5) >1 MiB input: forced >=4 row tiles (pipelined / dual-TC path).
        (jax.random.normal(ks[4], (128, 128, d_model), dtype=jnp.float32), {}),
    ]

    for idx, (x, kwargs) in enumerate(cases, 1):
        out = jax.block_until_ready(positional_encoding_forward(x, pe_table, **kwargs))
        ref = reference(x)
        assert out.shape == x.shape, f"shape mismatch in case {idx}"
        assert jnp.allclose(out, ref, atol=1e-6, rtol=1e-6), f"mismatch vs reference (case {idx})"

    print("KERNEL_OK")
</pallas_src>

<mosaic_0001>
module attributes {stable_mosaic.version = 11 : i64} {
  func.func @_pe_add_kernel(%arg0: i32, %arg1: i32, %arg2: memref<4x128xf32, #tpu.memory_space<vmem>>, %arg3: memref<4x128xf32, #tpu.memory_space<vmem>>, %arg4: memref<4x128xf32, #tpu.memory_space<vmem>>) attributes {dimension_semantics = [#tpu.dimension_semantics<parallel>, #tpu.dimension_semantics<parallel>], iteration_bounds = array<i64: 1, 1>, scalar_prefetch = 0 : i64, scratch_operands = 0 : i64, tpu.core_type = #tpu.core_type<tc>, window_params = [{transform_indices = @transform_0, window_bounds = array<i64: 4, 128>}, {transform_indices = @transform_1, window_bounds = array<i64: 4, 128>}, {transform_indices = @transform_2, window_bounds = array<i64: 4, 128>}]} {
    %c0 = arith.constant 0 : index
    %c0_0 = arith.constant 0 : index
    %0 = vector.load %arg3[%c0, %c0_0] : memref<4x128xf32, #tpu.memory_space<vmem>>, vector<4x128xf32>
    %c0_1 = arith.constant 0 : index
    %c0_2 = arith.constant 0 : index
    %1 = vector.load %arg2[%c0_1, %c0_2] : memref<4x128xf32, #tpu.memory_space<vmem>>, vector<4x128xf32>
    %2 = arith.addf %1, %0 : vector<4x128xf32>
    %c0_3 = arith.constant 0 : index
    %c0_4 = arith.constant 0 : index
    %3 = vector.load %arg4[%c0_3, %c0_4] : memref<4x128xf32, #tpu.memory_space<vmem>>, vector<4x128xf32>
    tpu.vector_store %arg4[%c0_3, %c0_4], %2 {strides = array<i32>} : memref<4x128xf32, #tpu.memory_space<vmem>>, vector<4x128xf32>,
    return
  }
  func.func @transform_0(%arg0: i32, %arg1: i32) -> (i32, i32) {
    %c0_i32 = arith.constant 0 : i32
    return %arg0, %arg1 : i32, i32
  }
  func.func @transform_1(%arg0: i32, %arg1: i32) -> (i32, i32) {
    %c0_i32 = arith.constant 0 : i32
    %c0_i32_0 = arith.constant 0 : i32
    return %arg0, %c0_i32 : i32, i32
  }
  func.func @transform_2(%arg0: i32, %arg1: i32) -> (i32, i32) {
    %c0_i32 = arith.constant 0 : i32
    return %arg0, %arg1 : i32, i32
  }
}

</mosaic_0001>

<llo_original>
// kernel: tpu_custom_call.1
$region0: #{tpu_custom_call.1}
  #allocation0 [shape = 'u32[]', space=smem, size = 0x4, offset = 0x4, fixed_abs, tag = 'smem constant byte address 0x4 - core index']
  #allocation1 [shape = 'u32[72,128]{1,0:T(1,128)}', space=vmem, size = 0x9000, scoped, tag = 'internal scratch']
  %s0 = inlined_call_operand.hbm [shape: f32[4,128], index: 0, kind: input, shape index: {}]
  %s1 = inlined_call_operand.hbm [shape: f32[4,128], index: 1, kind: input, shape index: {}]
  %s2 = inlined_call_operand.hbm [shape: f32[4,128], index: 2, kind: output, shape index: {}]
  %s3 = sld [smem:[#allocation0]]
  $region26: #{tpu_custom_call.1} parent=0
    _
  %s5 = ssub.s32 1, %s3
  %s6 = scalar_select 0, %s5, %s3
  $region1: #{tpu_custom_call.1} parent=0
    #allocation2 [shape = 'u8[2048]{0}', space=vmem, size = 0x800, scoped, tag = 'input window, operand 0, single buffered']
    #allocation3 [shape = 's32[1]{0}', space=sflag, size = 0x4, scoped, tag = 'scoped memory for tpu_custom_call.1']
    #allocation4 [shape = 's32[1]{0}', space=sflag, size = 0x4, scoped, tag = 'scoped memory for tpu_custom_call.1']
    #allocation5 [shape = 'u8[2048]{0}', space=vmem, size = 0x800, scoped, tag = 'input window, operand 1, single buffered']
    #allocation6 [shape = 's32[1]{0}', space=sflag, size = 0x4, scoped, tag = 'scoped memory for tpu_custom_call.1']
    #allocation7 [shape = 'u8[2048]{0}', space=vmem, size = 0x800, scoped, tag = 'output window, operand 0, single buffered']
    %7 = vsyncpa [#allocation3], 0
    %8 = vsyncpa [#allocation6], 0
    %9 = vsyncpa [#allocation4], 0
    // Predicated region
    $region2: #{tpu_custom_call.1} parent=1 // pred_check
      _
    $region3: #{tpu_custom_call.1} parent=1 // pred_check_branch
      %11 = sbr.rel (0) target = $region5
    $region4: #{tpu_custom_call.1} parent=1 // pred_region
      %13 = vsyncadd [#allocation3], 0
      %s15 = sshll.u32 %s0, 4
      %s16 = int_to_ptr.hbm [resolvable:$true] %s15
      %s17 = sshll.u32 [#allocation2], 4
      %s18 = int_to_ptr.vmem [resolvable:$true] %s17
      %20 = dma.hbm_to_vmem [thread:$0]  %s16, 64, %s18, [#allocation3]
    $region5: #{tpu_custom_call.1} parent=1 // pred_fallthru
      _
    // Predicated region
    $region6: #{tpu_custom_call.1} parent=1 // pred_check
      _
    $region7: #{tpu_custom_call.1} parent=1 // pred_check_branch
      %22 = sbr.rel (0) target = $region9
    $region8: #{tpu_custom_call.1} parent=1 // pred_region
      %24 = vsyncadd [#allocation6], 0
      %s26 = sshll.u32 %s1, 4
      %s27 = int_to_ptr.hbm [resolvable:$true] %s26
      %s28 = sshll.u32 [#allocation5], 4
      %s29 = int_to_ptr.vmem [resolvable:$true] %s28
      %31 = dma.hbm_to_vmem [thread:$0]  %s27, 64, %s29, [#allocation6]
    $region9: #{tpu_custom_call.1} parent=1 // pred_fallthru
      _
    // Predicated region
    $region10: #{tpu_custom_call.1} parent=1 // pred_check
      _
    $region11: #{tpu_custom_call.1} parent=1 // pred_check_branch
      %33 = sbr.rel (0) target = $region13
    $region12: #{tpu_custom_call.1} parent=1 // pred_region
      %35 = dma.done [#allocation3], 64
    $region13: #{tpu_custom_call.1} parent=1 // pred_fallthru
      _
    // Predicated region
    $region14: #{tpu_custom_call.1} parent=1 // pred_check
      _
    $region15: #{tpu_custom_call.1} parent=1 // pred_check_branch
      %37 = sbr.rel (0) target = $region17
    $region16: #{tpu_custom_call.1} parent=1 // pred_region
      %39 = dma.done [#allocation6], 64
    $region17: #{tpu_custom_call.1} parent=1 // pred_fallthru
      _
    %v40 = vld [vmem:[#allocation5] sm:$0xf]
    %v41 = vld [vmem:[#allocation2] sm:$0xf]
    %v42 = vadd.f32 %v41, %v40
    %43 = vst [vmem:[#allocation7] sm:$0xf] %v42
    // Predicated region
    $region18: #{tpu_custom_call.1} parent=1 // pred_check
      _
    $region19: #{tpu_custom_call.1} parent=1 // pred_check_branch
      %45 = sbr.rel (0) target = $region21
    $region20: #{tpu_custom_call.1} parent=1 // pred_region
      %47 = vsyncadd [#allocation4], 0
      %s49 = sshll.u32 [#allocation7], 4
      %s50 = int_to_ptr.vmem [resolvable:$true] %s49
      %s51 = sshll.u32 %s2, 4
      %s52 = int_to_ptr.hbm [resolvable:$true] %s51
      %54 = dma.vmem_to_hbm [thread:$0]  %s50, 64, %s52, [#allocation4]
    $region21: #{tpu_custom_call.1} parent=1 // pred_fallthru
      _
    // Predicated region
    $region22: #{tpu_custom_call.1} parent=1 // pred_check
      _
    $region23: #{tpu_custom_call.1} parent=1 // pred_check_branch
      %56 = sbr.rel (0) target = $region25
    $region24: #{tpu_custom_call.1} parent=1 // pred_region
      %58 = dma.done [#allocation4], 64
    $region25: #{tpu_custom_call.1} parent=1 // pred_fallthru
      _
    %59 = vsyncpa [#allocation3], 1
    %60 = vsyncpa [#allocation6], 1
    %61 = vsyncpa [#allocation4], 1

</llo_original>
